<compile_context>
chip_gen: v7x
topology: tpu7x:2x2x1
jax: 0.10.0
libtpu: 0.0.40
codegen_flags: <defaults>
</compile_context>

<pallas_src>
import math
import functools

import jax
import jax.numpy as jnp
from jax.experimental import pallas as pl
from jax.experimental.pallas import tpu as pltpu

LN_EPS = 1e-5                 # torch.nn.LayerNorm default eps
INV_SQRT2 = 1.0 / math.sqrt(2.0)


def _layernorm_f32(x_ref, gb_ref):
    x = x_ref[...].astype(jnp.float32)
    mean = jnp.mean(x, axis=-1, keepdims=True)
    centered = x - mean
    var = jnp.mean(centered * centered, axis=-1, keepdims=True)
    xn = centered * jax.lax.rsqrt(var + LN_EPS)
    gamma = gb_ref[0:1, :].astype(jnp.float32)
    beta = gb_ref[1:2, :].astype(jnp.float32)
    return xn * gamma + beta


def _gelu_exact(h):
    # Exact erf GELU (torch.nn.GELU default); divide folded into a multiply.
    return 0.5 * h * (1.0 + jax.lax.erf(h * INV_SQRT2))


def _ffn_kernel_single(x_ref, gb_ref, w1_ref, w2_ref, o_ref):
    # Whole hidden dim resident: no scratch, no accumulator.
    xn = _layernorm_f32(x_ref, gb_ref).astype(w1_ref.dtype)
    h = jnp.dot(xn, w1_ref[...], preferred_element_type=jnp.float32)
    h = _gelu_exact(h)
    out = jnp.dot(h.astype(w2_ref.dtype), w2_ref[...],
                  preferred_element_type=jnp.float32)
    o_ref[...] = out.astype(o_ref.dtype)


def _ffn_kernel_tiled(x_ref, gb_ref, w1_ref, w2_ref, o_ref, xn_ref, acc_ref):
    # x_ref: (br, dim)   gb_ref: (2, dim)   w1_ref: (dim, bh)   w2_ref: (bh, dim)
    # xn_ref: (br, dim) cached LayerNorm output (compute dtype)
    # acc_ref: (br, dim) f32 accumulator over hidden chunks
    j = pl.program_id(1)

    @pl.when(j == 0)
    def _():
        xn_ref[...] = _layernorm_f32(x_ref, gb_ref).astype(xn_ref.dtype)

    h = jnp.dot(xn_ref[...], w1_ref[...], preferred_element_type=jnp.float32)
    h = _gelu_exact(h)
    partial = jnp.dot(h.astype(w2_ref.dtype), w2_ref[...],
                      preferred_element_type=jnp.float32)

    @pl.when(j == 0)
    def _():
        acc_ref[...] = partial          # first chunk assigns (no zero-init pass)

    @pl.when(j > 0)
    def _():
        acc_ref[...] += partial

    @pl.when(j == pl.num_programs(1) - 1)
    def _():
        o_ref[...] = acc_ref[...].astype(o_ref.dtype)


def _round_up(x, m):
    return (x + m - 1) // m * m


@functools.partial(jax.jit, static_argnames=("block_rows", "block_hidden"))
def feed_forward(x, gamma, beta, w1, w2, *, block_rows=256, block_hidden=512):
    """x: [batch, seq, dim].  w1: [dim, hidden], w2: [hidden, dim] (transposed
    relative to torch Linear.weight so the kernel does plain row-major matmuls)."""
    batch, seq, dim = x.shape
    hidden = w1.shape[1]
    rows = batch * seq

    # Row tile: as large as requested, never bigger than the (8-aligned) row count.
    br = min(block_rows, _round_up(rows, 8))
    rows_p = _round_up(rows, br)

    x2d = x.reshape(rows, dim)
    if rows_p != rows:
        x2d = jnp.pad(x2d, ((0, rows_p - rows), (0, 0)))

    gb = jnp.stack([gamma, beta], axis=0)            # (2, dim) fused LN params
    compute_dtype = w1.dtype                         # MXU input dtype

    common = dict(
        out_shape=jax.ShapeDtypeStruct((rows_p, dim), x.dtype),
    )

    if hidden <= block_hidden:
        # Fast path: entire hidden dim resident, single grid axis over rows.
        out2d = pl.pallas_call(
            _ffn_kernel_single,
            grid_spec=pltpu.PrefetchScalarGridSpec(
                num_scalar_prefetch=0,
                grid=(rows_p // br,),
                in_specs=[
                    pl.BlockSpec((br, dim), lambda i: (i, 0)),
                    pl.BlockSpec((2, dim), lambda i: (0, 0)),
                    pl.BlockSpec((dim, hidden), lambda i: (0, 0)),
                    pl.BlockSpec((hidden, dim), lambda i: (0, 0)),
                ],
                out_specs=pl.BlockSpec((br, dim), lambda i: (i, 0)),
            ),
            compiler_params=pltpu.CompilerParams(
                dimension_semantics=("parallel",),
                vmem_limit_bytes=64 * 1024 * 1024,
            ),
            **common,
        )(x2d, gb, w1, w2)
    else:
        # Hidden-tiled path: pad hidden to a multiple of the chunk (zero W1 cols
        # -> GELU(0)=0 -> zero W2 rows contribute nothing: exact).
        bh = block_hidden
        hidden_p = _round_up(hidden, bh)
        if hidden_p != hidden:
            w1 = jnp.pad(w1, ((0, 0), (0, hidden_p - hidden)))
            w2 = jnp.pad(w2, ((0, hidden_p - hidden), (0, 0)))

        out2d = pl.pallas_call(
            _ffn_kernel_tiled,
            grid_spec=pltpu.PrefetchScalarGridSpec(
                num_scalar_prefetch=0,
                grid=(rows_p // br, hidden_p // bh),   # rows parallel, hidden reduction last
                in_specs=[
                    pl.BlockSpec((br, dim), lambda i, j: (i, 0)),   # x row tile (resident over j)
                    pl.BlockSpec((2, dim), lambda i, j: (0, 0)),    # gamma/beta fused
                    pl.BlockSpec((dim, bh), lambda i, j: (0, j)),   # W1 hidden chunk
                    pl.BlockSpec((bh, dim), lambda i, j: (j, 0)),   # W2 hidden chunk
                ],
                out_specs=pl.BlockSpec((br, dim), lambda i, j: (i, 0)),
                scratch_shapes=[
                    pltpu.VMEM((br, dim), compute_dtype),   # cached LayerNorm output
                    pltpu.VMEM((br, dim), jnp.float32),     # f32 accumulator
                ],
            ),
            compiler_params=pltpu.CompilerParams(
                dimension_semantics=("parallel", "arbitrary"),
                vmem_limit_bytes=64 * 1024 * 1024,
            ),
            **common,
        )(x2d, gb, w1, w2)

    if rows_p != rows:
        out2d = out2d[:rows]
    return out2d.reshape(batch, seq, dim)


def reference_ffn(x, gamma, beta, w1, w2):
    xf = x.astype(jnp.float32)
    mean = jnp.mean(xf, axis=-1, keepdims=True)
    var = jnp.mean((xf - mean) ** 2, axis=-1, keepdims=True)
    xn = (xf - mean) * jax.lax.rsqrt(var + LN_EPS) * gamma + beta
    h = xn @ w1
    h = 0.5 * h * (1.0 + jax.lax.erf(h * INV_SQRT2))
    return (h @ w2).astype(x.dtype)


if __name__ == "__main__":
    batch, seq, dim, hidden = 2, 8, 32, 64

    key = jax.random.PRNGKey(0)
    kx, kw1, kw2 = jax.random.split(key, 3)

    x = jax.random.normal(kx, (batch, seq, dim), dtype=jnp.float32)

    # Deterministic parameters (synthetic; mirror nn.LayerNorm / nn.Linear shapes).
    gamma = jnp.ones((dim,), dtype=jnp.float32)     # LayerNorm weight
    beta = jnp.zeros((dim,), dtype=jnp.float32)     # LayerNorm bias
    # torch Linear(dim, hidden).weight has shape (hidden, dim); store transposed.
    w1 = jax.random.normal(kw1, (dim, hidden), dtype=jnp.float32) * (1.0 / math.sqrt(dim))
    w2 = jax.random.normal(kw2, (hidden, dim), dtype=jnp.float32) * (1.0 / math.sqrt(hidden))

    # Fast path (hidden fits in one chunk).
    out = feed_forward(x, gamma, beta, w1, w2)
    out = jax.block_until_ready(out)
    ref = reference_ffn(x, gamma, beta, w1, w2)
    assert out.shape == (batch, seq, dim)
    assert jnp.allclose(out, ref, atol=1e-4, rtol=1e-4), "mismatch vs reference (fast path)"

    # Also exercise the hidden-tiled accumulation path at the same small shapes.
    out_tiled = feed_forward(x, gamma, beta, w1, w2, block_hidden=32)
    out_tiled = jax.block_until_ready(out_tiled)
    assert jnp.allclose(out_tiled, ref, atol=1e-4, rtol=1e-4), "mismatch vs reference (tiled path)"

    print("KERNEL_OK")
</pallas_src>

<mosaic_0001>
module attributes {stable_mosaic.version = 11 : i64} {
  func.func @_ffn_kernel_single(%arg0: i32, %arg1: memref<16x32xf32, #tpu.memory_space<vmem>>, %arg2: memref<2x32xf32, #tpu.memory_space<vmem>>, %arg3: memref<32x64xf32, #tpu.memory_space<vmem>>, %arg4: memref<64x32xf32, #tpu.memory_space<vmem>>, %arg5: memref<16x32xf32, #tpu.memory_space<vmem>>) attributes {dimension_semantics = [#tpu.dimension_semantics<parallel>], iteration_bounds = array<i64: 1>, scalar_prefetch = 0 : i64, scratch_operands = 0 : i64, tpu.core_type = #tpu.core_type<tc>, window_params = [{transform_indices = @transform_0, window_bounds = array<i64: 16, 32>}, {pipeline_mode = #tpu.pipeline_mode<synchronous>, transform_indices = @transform_1, window_bounds = array<i64: 2, 32>}, {pipeline_mode = #tpu.pipeline_mode<synchronous>, transform_indices = @transform_2, window_bounds = array<i64: 32, 64>}, {pipeline_mode = #tpu.pipeline_mode<synchronous>, transform_indices = @transform_3, window_bounds = array<i64: 64, 32>}, {transform_indices = @transform_4, window_bounds = array<i64: 16, 32>}]} {
    %c0 = arith.constant 0 : index
    %c0_0 = arith.constant 0 : index
    %0 = vector.load %arg1[%c0, %c0_0] : memref<16x32xf32, #tpu.memory_space<vmem>>, vector<16x32xf32>
    %cst = arith.constant dense<0.000000e+00> : vector<16xf32>
    %1 = vector.multi_reduction <add>, %0, %cst [1] : vector<16x32xf32> to vector<16xf32>
    %2 = vector.shape_cast %1 : vector<16xf32> to vector<16x1xf32>
    %cst_1 = arith.constant 3.200000e+01 : f32
    %3 = vector.broadcast %cst_1 : f32 to vector<16x1xf32>
    %4 = arith.divf %2, %3 : vector<16x1xf32>
    %5 = vector.broadcast %4 : vector<16x1xf32> to vector<16x32xf32>
    %6 = arith.subf %0, %5 : vector<16x32xf32>
    %7 = arith.mulf %6, %6 : vector<16x32xf32>
    %cst_2 = arith.constant dense<0.000000e+00> : vector<16xf32>
    %8 = vector.multi_reduction <add>, %7, %cst_2 [1] : vector<16x32xf32> to vector<16xf32>
    %9 = vector.shape_cast %8 : vector<16xf32> to vector<16x1xf32>
    %cst_3 = arith.constant 3.200000e+01 : f32
    %10 = vector.broadcast %cst_3 : f32 to vector<16x1xf32>
    %11 = arith.divf %9, %10 : vector<16x1xf32>
    %cst_4 = arith.constant 9.99999974E-6 : f32
    %12 = vector.broadcast %cst_4 : f32 to vector<16x1xf32>
    %13 = arith.addf %11, %12 : vector<16x1xf32>
    %14 = math.rsqrt %13 : vector<16x1xf32>
    %15 = vector.broadcast %14 : vector<16x1xf32> to vector<16x32xf32>
    %16 = arith.mulf %6, %15 : vector<16x32xf32>
    %c0_5 = arith.constant 0 : index
    %c0_6 = arith.constant 0 : index
    %17 = vector.load %arg2[%c0_5, %c0_6] : memref<2x32xf32, #tpu.memory_space<vmem>>, vector<1x32xf32>
    %c1 = arith.constant 1 : index
    %c0_7 = arith.constant 0 : index
    %18 = vector.load %arg2[%c1, %c0_7] : memref<2x32xf32, #tpu.memory_space<vmem>>, vector<1x32xf32>
    %19 = vector.broadcast %17 : vector<1x32xf32> to vector<16x32xf32>
    %20 = arith.mulf %16, %19 : vector<16x32xf32>
    %21 = vector.broadcast %18 : vector<1x32xf32> to vector<16x32xf32>
    %22 = arith.addf %20, %21 : vector<16x32xf32>
    %c0_8 = arith.constant 0 : index
    %c0_9 = arith.constant 0 : index
    %23 = vector.load %arg3[%c0_8, %c0_9] : memref<32x64xf32, #tpu.memory_space<vmem>>, vector<32x64xf32>
    %cst_10 = arith.constant dense<0.000000e+00> : vector<16x64xf32>
    %24 = tpu.matmul %22, %23, %cst_10 {dimension_numbers = #tpu.dot_dimension_numbers<[1], [0], [0], [1], [0, 0, 1, 1], [], []>} : vector<16x32xf32>, vector<32x64xf32>, vector<16x64xf32> -> vector<16x64xf32>
    %cst_11 = arith.constant 5.000000e-01 : f32
    %25 = vector.broadcast %cst_11 : f32 to vector<16x64xf32>
    %26 = arith.mulf %25, %24 : vector<16x64xf32>
    %cst_12 = arith.constant 0.707106769 : f32
    %27 = vector.broadcast %cst_12 : f32 to vector<16x64xf32>
    %28 = arith.mulf %24, %27 : vector<16x64xf32>
    %29 = math.erf %28 : vector<16x64xf32>
    %cst_13 = arith.constant 1.000000e+00 : f32
    %30 = vector.broadcast %cst_13 : f32 to vector<16x64xf32>
    %31 = arith.addf %30, %29 : vector<16x64xf32>
    %32 = arith.mulf %26, %31 : vector<16x64xf32>
    %c0_14 = arith.constant 0 : index
    %c0_15 = arith.constant 0 : index
    %33 = vector.load %arg4[%c0_14, %c0_15] : memref<64x32xf32, #tpu.memory_space<vmem>>, vector<64x32xf32>
    %cst_16 = arith.constant dense<0.000000e+00> : vector<16x32xf32>
    %34 = tpu.matmul %32, %33, %cst_16 {dimension_numbers = #tpu.dot_dimension_numbers<[1], [0], [0], [1], [0, 0, 1, 1], [], []>} : vector<16x64xf32>, vector<64x32xf32>, vector<16x32xf32> -> vector<16x32xf32>
    %c0_17 = arith.constant 0 : index
    %c0_18 = arith.constant 0 : index
    %35 = vector.load %arg5[%c0_17, %c0_18] : memref<16x32xf32, #tpu.memory_space<vmem>>, vector<16x32xf32>
    tpu.vector_store %arg5[%c0_17, %c0_18], %34 {strides = array<i32>} : memref<16x32xf32, #tpu.memory_space<vmem>>, vector<16x32xf32>,
    return
  }
  func.func @transform_0(%arg0: i32) -> (i32, i32) {
    %c0_i32 = arith.constant 0 : i32
    %c0_i32_0 = arith.constant 0 : i32
    return %arg0, %c0_i32 : i32, i32
  }
  func.func @transform_1(%arg0: i32) -> (i32, i32) {
    %c0_i32 = arith.constant 0 : i32
    %c0_i32_0 = arith.constant 0 : i32
    %c0_i32_1 = arith.constant 0 : i32
    return %c0_i32, %c0_i32_0 : i32, i32
  }
  func.func @transform_2(%arg0: i32) -> (i32, i32) {
    %c0_i32 = arith.constant 0 : i32
    %c0_i32_0 = arith.constant 0 : i32
    %c0_i32_1 = arith.constant 0 : i32
    return %c0_i32, %c0_i32_0 : i32, i32
  }
  func.func @transform_3(%arg0: i32) -> (i32, i32) {
    %c0_i32 = arith.constant 0 : i32
    %c0_i32_0 = arith.constant 0 : i32
    %c0_i32_1 = arith.constant 0 : i32
    return %c0_i32, %c0_i32_0 : i32, i32
  }
  func.func @transform_4(%arg0: i32) -> (i32, i32) {
    %c0_i32 = arith.constant 0 : i32
    %c0_i32_0 = arith.constant 0 : i32
    return %arg0, %c0_i32 : i32, i32
  }
}

</mosaic_0001>

<llo_original>
// kernel: feed_forward.1
$region0: #{feed_forward.1}
  #allocation0 [shape = 'u32[]', space=smem, size = 0x4, offset = 0x4, fixed_abs, tag = 'smem constant byte address 0x4 - core index']
  #allocation1 [shape = 'u32[144,128]{1,0:T(1,128)}', space=vmem, size = 0x12000, scoped, tag = 'internal scratch']
  %s0 = inlined_call_operand.hbm [shape: f32[16,32], index: 0, kind: input, shape index: {}]
  %s1 = inlined_call_operand.hbm [shape: f32[2,32], index: 1, kind: input, shape index: {}]
  %s2 = inlined_call_operand.hbm [shape: f32[32,64], index: 2, kind: input, shape index: {}]
  %s3 = inlined_call_operand.hbm [shape: f32[64,32], index: 3, kind: input, shape index: {}]
  %s4 = inlined_call_operand.hbm [shape: f32[16,32], index: 4, kind: output, shape index: {}]
  %s5 = sld [smem:[#allocation0]]
  $region42: #{feed_forward.1} parent=0
    _
  %s7 = ssub.s32 1, %s5
  %s8 = scalar_select 0, %s7, %s5
  $region1: #{feed_forward.1} parent=0
    #allocation2 [shape = 'u8[8192]{0}', space=vmem, size = 0x2000, scoped, tag = 'input window, operand 0, single buffered']
    #allocation3 [shape = 's32[1]{0}', space=sflag, size = 0x4, scoped, tag = 'scoped memory for feed_forward.1']
    #allocation4 [shape = 's32[1]{0}', space=sflag, size = 0x4, scoped, tag = 'scoped memory for feed_forward.1']
    #allocation5 [shape = 'u8[1024]{0}', space=vmem, size = 0x400, scoped, tag = 'input window, operand 1, single buffered']
    #allocation6 [shape = 's32[1]{0}', space=sflag, size = 0x4, scoped, tag = 'scoped memory for feed_forward.1']
    #allocation7 [shape = 'u8[16384]{0}', space=vmem, size = 0x4000, scoped, tag = 'input window, operand 2, single buffered']
    #allocation8 [shape = 'u8[32768]{0}', space=vmem, size = 0x8000, scoped, tag = 'input window, operand 3, single buffered']
    #allocation9 [shape = 's32[1]{0}', space=sflag, size = 0x4, scoped, tag = 'scoped memory for feed_forward.1']
    #allocation10 [shape = 'u8[8192]{0}', space=vmem, size = 0x2000, scoped, tag = 'output window, operand 0, single buffered']
    %9 = vsyncpa [#allocation3], 0
    %10 = vsyncpa [#allocation6], 0
    %11 = vsyncpa [#allocation9], 0
    %12 = vsyncpa [#allocation4], 0
    // Predicated region
    $region2: #{feed_forward.1} parent=1 // pred_check
      _
    $region3: #{feed_forward.1} parent=1 // pred_check_branch
      %14 = sbr.rel (0) target = $region5
    $region4: #{feed_forward.1} parent=1 // pred_region
      %s16 = ssub.s32 256, 256
      %17 = vsyncadd [#allocation3], %s16
      %s18 = sshll.u32 [#allocation2], 4
      %s19 = int_to_ptr.vmem [resolvable:$true] %s18
      %24 = dma.hbm_to_vmem [thread:$0]  %s0, 256, %s19, [#allocation3], 128, 128, 8
    $region5: #{feed_forward.1} parent=1 // pred_fallthru
      _
    // Predicated region
    $region6: #{feed_forward.1} parent=1 // pred_check
      _
    $region7: #{feed_forward.1} parent=1 // pred_check_branch
      %26 = sbr.rel (0) target = $region9
    $region8: #{feed_forward.1} parent=1 // pred_region
      %s28 = ssub.s32 32, 32
      %29 = vsyncadd [#allocation6], %s28
      %s31 = sshll.u32 [#allocation5], 4
      %s32 = int_to_ptr.vmem [resolvable:$true] %s31
      %34 = dma.hbm_to_vmem [thread:$0]  %s1, 32, %s32, [#allocation6]
    $region9: #{feed_forward.1} parent=1 // pred_fallthru
      _
    // Predicated region
    $region10: #{feed_forward.1} parent=1 // pred_check
      _
    $region11: #{feed_forward.1} parent=1 // pred_check_branch
      %36 = sbr.rel (0) target = $region13
    $region12: #{feed_forward.1} parent=1 // pred_region
      %s38 = ssub.s32 512, 512
      %39 = vsyncadd [#allocation6], %s38
      %s40 = sshll.u32 [#allocation7], 4
      %s41 = int_to_ptr.vmem [resolvable:$true] %s40
      %46 = dma.hbm_to_vmem [thread:$0]  %s2, 512, %s41, [#allocation6], 128, 128, 8
    $region13: #{feed_forward.1} parent=1 // pred_fallthru
      _
    // Predicated region
    $region14: #{feed_forward.1} parent=1 // pred_check
      _
    $region15: #{feed_forward.1} parent=1 // pred_check_branch
      %48 = sbr.rel (0) target = $region17
    $region16: #{feed_forward.1} parent=1 // pred_region
      %s50 = ssub.s32 1024, 1024
      %51 = vsyncadd [#allocation9], %s50
      %s52 = sshll.u32 [#allocation8], 4
      %s53 = int_to_ptr.vmem [resolvable:$true] %s52
      %58 = dma.hbm_to_vmem [thread:$0]  %s3, 1024, %s53, [#allocation9], 128, 128, 8
    $region17: #{feed_forward.1} parent=1 // pred_fallthru
      _
    // Predicated region
    $region18: #{feed_forward.1} parent=1 // pred_check
      _
    $region19: #{feed_forward.1} parent=1 // pred_check_branch
      %60 = sbr.rel (0) target = $region21
    $region20: #{feed_forward.1} parent=1 // pred_region
      %61 = dma.done [#allocation3], 256
    $region21: #{feed_forward.1} parent=1 // pred_fallthru
      _
    // Predicated region
    $region22: #{feed_forward.1} parent=1 // pred_check
      _
    $region23: #{feed_forward.1} parent=1 // pred_check_branch
      %63 = sbr.rel (0) target = $region25
    $region24: #{feed_forward.1} parent=1 // pred_region
      %64 = dma.done [#allocation6], 32
    $region25: #{feed_forward.1} parent=1 // pred_fallthru
      _
    // Predicated region
    $region26: #{feed_forward.1} parent=1 // pred_check
      _
    $region27: #{feed_forward.1} parent=1 // pred_check_branch
      %66 = sbr.rel (0) target = $region29
    $region28: #{feed_forward.1} parent=1 // pred_region
      %67 = dma.done [#allocation6], 512
    $region29: #{feed_forward.1} parent=1 // pred_fallthru
      _
    // Predicated region
    $region30: #{feed_forward.1} parent=1 // pred_check
      _
    $region31: #{feed_forward.1} parent=1 // pred_check_branch
      %69 = sbr.rel (0) target = $region33
    $region32: #{feed_forward.1} parent=1 // pred_region
      %70 = dma.done [#allocation9], 1024
    $region33: #{feed_forward.1} parent=1 // pred_fallthru
      _
    %v71 = vld [vmem:[#allocation2] sm:$0xff]
    %v72 = vld [vmem:[#allocation2 + $0x8] sm:$0xff]
    %vm73 = vcmask 261120
    %v74 = vsel %vm73, %v71, 0.0
    %75 = vadd.xlane.f32.xlu0 %v74
    %v76 = vpop.xlane.xlu0 %75
    %v77 = vsel %vm73, %v72, 0.0
    %78 = vadd.xlane.f32.xlu0 %v77
    %v79 = vpop.xlane.xlu0 %78
    %v80 = vrcp.pop 32.0
    %v81 = vmul.f32 %v76, %v80
    %v82 = vmul.f32 %v79, %v80
    %v83 = vsub.f32 %v71, %v81
    %v84 = vsub.f32 %v72, %v82
    %v85 = vmul.f32 %v83, %v83
    %v86 = vmul.f32 %v84, %v84
    %v87 = vsel %vm73, %v85, 0.0
    %88 = vadd.xlane.f32.xlu0 %v87
    %v89 = vpop.xlane.xlu0 %88
    %v90 = vsel %vm73, %v86, 0.0
    %91 = vadd.xlane.f32.xlu0 %v90
    %v92 = vpop.xlane.xlu0 %91
    %v93 = vmul.f32 %v89, %v80
    %v94 = vmul.f32 %v92, %v80
    %v95 = vadd.f32 %v93, 1e-05
    %v96 = vadd.f32 %v94, 1e-05
    %v97 = vrsqrt.pop %v95
    %v98 = vrsqrt.pop %v96
    %v99 = vmul.f32 %v83, %v97
    %v100 = vmul.f32 %v84, %v98
    %v101 = vld [vmem:[#allocation5] sm:$0x1]
    %v102 = vld [vmem:[#allocation5 + $0x1] sm:$0x1]
    %v103 = vlaneseq
    %v104 = vshrl.u32 %v103, 7
    %v105 = vsub.s32 0, %v104
    %v106 = vrot.slane %v101, %v105
    %v107 = vmul.f32 %v99, %v106
    %v108 = vmul.f32 %v100, %v106
    %v109 = vlaneseq
    %v110 = vshrl.u32 %v109, 7
    %v111 = vsub.s32 0, %v110
    %v112 = vrot.slane %v102, %v111
    %v113 = vadd.f32 %v107, %v112
    %v114 = vadd.f32 %v108, %v112
    %v115 = vld [vmem:[#allocation7] sm:$0xff]
    %v116 = vld [vmem:[#allocation7 + $0x8] sm:$0xff]
    %v117 = vld [vmem:[#allocation7 + $0x10] sm:$0xff]
    %v118 = vld [vmem:[#allocation7 + $0x18] sm:$0xff]
    %v120 = vsel %vm73, %v113, 0
    %v123 = vsel %vm73, %v114, 0
    %125 = vmatprep.subr.mxu0 0.0
    %126 = vmatpush1.msra.mxu0 %v115
    %127 = vmatprep.subr.mxu0 0.0
    %128 = vmatpush1.msra.mxu0 %v116
    %129 = vmatprep.subr.mxu0 0.0
    %130 = vmatpush1.msra.mxu0 %v117
    %131 = vmatprep.subr.mxu0 0.0
    %132 = vmatpush1.msra.mxu0 %v118
    %133 = vmatprep.subr.mxu0 0.0
    %134 = vmatpush1.msra.mxu0 0.0
    %135 = vmatprep.subr.mxu0 0.0
    %136 = vmatpush1.msra.mxu0 0.0
    %137 = vmatprep.subr.mxu0 0.0
    %138 = vmatpush1.msra.mxu0 0.0
    %139 = vmatprep.subr.mxu0 0.0
    %140 = vmatpush1.msra.mxu0 0.0
    %141 = vmatprep.subr.mxu0 0.0
    %142 = vmatpush1.msra.mxu0 0.0
    %143 = vmatprep.subr.mxu0 0.0
    %144 = vmatpush1.msra.mxu0 0.0
    %145 = vmatprep.subr.mxu0 0.0
    %146 = vmatpush1.msra.mxu0 0.0
    %147 = vmatprep.subr.mxu0 0.0
    %148 = vmatpush1.msra.mxu0 0.0
    %149 = vmatprep.subr.mxu0 0.0
    %150 = vmatpush1.msra.mxu0 0.0
    %151 = vmatprep.subr.mxu0 0.0
    %152 = vmatpush1.msra.mxu0 0.0
    %153 = vmatprep.subr.mxu0 0.0
    %154 = vmatpush1.msra.mxu0 0.0
    %155 = vmatprep.subr.mxu0 0.0
    %156 = vmatpush1.msra.mxu0 0.0
    %157 = vmatprep.subr.mxu0 0.0
    %158 = vmatpush1.msra.mxu0 0.0
    %159 = vmatprep.subr.mxu0 0.0
    %160 = vmatpush1.msra.mxu0 0.0
    %161 = vmatprep.subr.mxu0 0.0
    %162 = vmatpush1.msra.mxu0 0.0
    %163 = vmatprep.subr.mxu0 0.0
    %164 = vmatpush1.msra.mxu0 0.0
    %165 = vmatprep.subr.mxu0 0.0
    %166 = vmatpush1.msra.mxu0 0.0
    %167 = vmatprep.subr.mxu0 0.0
    %168 = vmatpush1.msra.mxu0 0.0
    %169 = vmatprep.subr.mxu0 0.0
    %170 = vmatpush1.msra.mxu0 0.0
    %171 = vmatprep.subr.mxu0 0.0
    %172 = vmatpush1.msra.mxu0 0.0
    %173 = vmatprep.subr.mxu0 0.0
    %174 = vmatpush1.msra.mxu0 0.0
    %175 = vmatprep.subr.mxu0 0.0
    %176 = vmatpush1.msra.mxu0 0.0
    %177 = vmatprep.subr.mxu0 0.0
    %178 = vmatpush1.msra.mxu0 0.0
    %179 = vmatprep.subr.mxu0 0.0
    %180 = vmatpush1.msra.mxu0 0.0
    %181 = vmatprep.subr.mxu0 0.0
    %182 = vmatpush1.msra.mxu0 0.0
    %183 = vmatprep.subr.mxu0 0.0
    %184 = vmatpush1.msra.mxu0 0.0
    %185 = vmatprep.subr.mxu0 0.0
    %186 = vmatpush1.msra.mxu0 0.0
    %187 = vmatprep.subr.mxu0 0.0
    %188 = vmatpush1.msra.mxu0 0.0
    %189 = vmatprep.mubr.f32.mxu0 0.0
    %190 = vmatmul.mubr.f32.gmra.mrb[0].mxu0 %v120
    %v191 = vpop.f32.mrb[0].mxu0
    %v192 = vadd.f32 0.0, %v191
    %v193 = vpop.f32.mrb[0].mxu0
    %194 = vmatprep.mubr.f32.mxu0 0.0
    %195 = vmatmul.mubr.f32.gmra.mrb[0].mxu0 %v123
    %v196 = vpop.f32.mrb[0].mxu0
    %v197 = vadd.f32 0.0, %v196
    %v198 = vpop.f32.mrb[0].mxu0
    %199 = vdwg.mxu0
    %v200 = vmul.f32 %v192, 0.5
    %v201 = vmul.f32 %v197, 0.5
    %v202 = vmul.f32 %v192, 0.70710677
    %v203 = vmul.f32 %v197, 0.70710677
    %v204 = verf.f32.pop %v202
    %v205 = verf.f32.pop %v203
    %v206 = vadd.f32 %v204, 1.0
    %v207 = vadd.f32 %v205, 1.0
    %v208 = vmul.f32 %v200, %v206
    %v209 = vmul.f32 %v201, %v207
    %v210 = vld [vmem:[#allocation8] sm:$0xff]
    %v211 = vld [vmem:[#allocation8 + $0x8] sm:$0xff]
    %v212 = vld [vmem:[#allocation8 + $0x10] sm:$0xff]
    %v213 = vld [vmem:[#allocation8 + $0x18] sm:$0xff]
    %v214 = vld [vmem:[#allocation8 + $0x20] sm:$0xff]
    %v215 = vld [vmem:[#allocation8 + $0x28] sm:$0xff]
    %v216 = vld [vmem:[#allocation8 + $0x30] sm:$0xff]
    %v217 = vld [vmem:[#allocation8 + $0x38] sm:$0xff]
    %vm218 = vcmask 523264
    %v220 = vsel %vm218, %v208, 0
    %v223 = vsel %vm218, %v209, 0
    %225 = vmatprep.subr.mxu0 0.0
    %226 = vmatpush1.msra.mxu0 %v210
    %227 = vmatprep.subr.mxu0 0.0
    %228 = vmatpush1.msra.mxu0 %v211
    %229 = vmatprep.subr.mxu0 0.0
    %230 = vmatpush1.msra.mxu0 %v212
    %231 = vmatprep.subr.mxu0 0.0
    %232 = vmatpush1.msra.mxu0 %v213
    %233 = vmatprep.subr.mxu0 0.0
    %234 = vmatpush1.msra.mxu0 %v214
    %235 = vmatprep.subr.mxu0 0.0
    %236 = vmatpush1.msra.mxu0 %v215
    %237 = vmatprep.subr.mxu0 0.0
    %238 = vmatpush1.msra.mxu0 %v216
    %239 = vmatprep.subr.mxu0 0.0
    %240 = vmatpush1.msra.mxu0 %v217
    %241 = vmatprep.subr.mxu0 0.0
    %242 = vmatpush1.msra.mxu0 0.0
    %243 = vmatprep.subr.mxu0 0.0
    %244 = vmatpush1.msra.mxu0 0.0
    %245 = vmatprep.subr.mxu0 0.0
    %246 = vmatpush1.msra.mxu0 0.0
    %247 = vmatprep.subr.mxu0 0.0
    %248 = vmatpush1.msra.mxu0 0.0
    %249 = vmatprep.subr.mxu0 0.0
    %250 = vmatpush1.msra.mxu0 0.0
    %251 = vmatprep.subr.mxu0 0.0
    %252 = vmatpush1.msra.mxu0 0.0
    %253 = vmatprep.subr.mxu0 0.0
    %254 = vmatpush1.msra.mxu0 0.0
    %255 = vmatprep.subr.mxu0 0.0
    %256 = vmatpush1.msra.mxu0 0.0
    %257 = vmatprep.subr.mxu0 0.0
    %258 = vmatpush1.msra.mxu0 0.0
    %259 = vmatprep.subr.mxu0 0.0
    %260 = vmatpush1.msra.mxu0 0.0
    %261 = vmatprep.subr.mxu0 0.0
    %262 = vmatpush1.msra.mxu0 0.0
    %263 = vmatprep.subr.mxu0 0.0
    %264 = vmatpush1.msra.mxu0 0.0
    %265 = vmatprep.subr.mxu0 0.0
    %266 = vmatpush1.msra.mxu0 0.0
    %267 = vmatprep.subr.mxu0 0.0
    %268 = vmatpush1.msra.mxu0 0.0
    %269 = vmatprep.subr.mxu0 0.0
    %270 = vmatpush1.msra.mxu0 0.0
    %271 = vmatprep.subr.mxu0 0.0
    %272 = vmatpush1.msra.mxu0 0.0
    %273 = vmatprep.subr.mxu0 0.0
    %274 = vmatpush1.msra.mxu0 0.0
    %275 = vmatprep.subr.mxu0 0.0
    %276 = vmatpush1.msra.mxu0 0.0
    %277 = vmatprep.subr.mxu0 0.0
    %278 = vmatpush1.msra.mxu0 0.0
    %279 = vmatprep.subr.mxu0 0.0
    %280 = vmatpush1.msra.mxu0 0.0
    %281 = vmatprep.subr.mxu0 0.0
    %282 = vmatpush1.msra.mxu0 0.0
    %283 = vmatprep.subr.mxu0 0.0
    %284 = vmatpush1.msra.mxu0 0.0
    %285 = vmatprep.subr.mxu0 0.0
    %286 = vmatpush1.msra.mxu0 0.0
    %287 = vmatprep.subr.mxu0 0.0
    %288 = vmatpush1.msra.mxu0 0.0
    %289 = vmatprep.mubr.f32.mxu0 0.0
    %290 = vmatmul.mubr.f32.gmra.mrb[0].mxu0 %v220
    %v291 = vpop.f32.mrb[0].mxu0
    %v292 = vadd.f32 0.0, %v291
    %v293 = vpop.f32.mrb[0].mxu0
    %294 = vmatprep.mubr.f32.mxu0 0.0
    %295 = vmatmul.mubr.f32.gmra.mrb[0].mxu0 %v223
    %v296 = vpop.f32.mrb[0].mxu0
    %v297 = vadd.f32 0.0, %v296
    %v298 = vpop.f32.mrb[0].mxu0
    %299 = vdwg.mxu0
    %300 = vst.msk [vmem:[#allocation10] sm:$0xff] %vm73, %v292
    %301 = vst.msk [vmem:[#allocation10 + $0x8] sm:$0xff] %vm73, %v297
    // Predicated region
    $region34: #{feed_forward.1} parent=1 // pred_check
      _
    $region35: #{feed_forward.1} parent=1 // pred_check_branch
      %303 = sbr.rel (0) target = $region37
    $region36: #{feed_forward.1} parent=1 // pred_region
      %s305 = ssub.s32 256, 256
      %306 = vsyncadd [#allocation4], %s305
      %s307 = sshll.u32 [#allocation10], 4
      %s308 = int_to_ptr.vmem [resolvable:$true] %s307
      %313 = dma.vmem_to_hbm [thread:$0]  %s308, 256, %s4, [#allocation4], 128, 128, 8
    $region37: #{feed_forward.1} parent=1 // pred_fallthru
      _
    // Predicated region
    $region38: #{feed_forward.1} parent=1 // pred_check
      _
    $region39: #{feed_forward.1} parent=1 // pred_check_branch
      %315 = sbr.rel (0) target = $region41
    $region40: #{feed_forward.1} parent=1 // pred_region
      %316 = dma.done [#allocation4], 256
    $region41: #{feed_forward.1} parent=1 // pred_fallthru
      _
    %317 = vsyncpa [#allocation3], 1
    %318 = vsyncpa [#allocation6], 1
    %319 = vsyncpa [#allocation9], 1
    %320 = vsyncpa [#allocation4], 1

</llo_original>
